<compile_context>
chip_gen: v6e
topology: v6e:2x2x1
jax: 0.10.0
libtpu: 0.0.40
codegen_flags: <defaults>
</compile_context>

<pallas_src>
import jax
import jax.numpy as jnp
from jax.experimental import pallas as pl
from jax.experimental.pallas import tpu as pltpu

_LN_EPS = 1e-5


def _ffn_kernel(x_ref, gamma_ref, w1_ref, b1_ref, w2_ref, b2_ref, o_ref):
    # x_ref:(TM,D) native dtype | gamma:(1,D) f32 | w1:(D,I) bf16 | b1:(1,I) f32
    # w2:(I,D) bf16             | b2:(1,D) f32    | o_ref:(TM,D) out dtype
    x = x_ref[...].astype(jnp.float32)

    # LayerNorm over the feature (lane) dim; beta is a zeros buffer in the module.
    mu = jnp.mean(x, axis=-1, keepdims=True)
    var = jnp.mean(jnp.square(x - mu), axis=-1, keepdims=True)
    xn = (x - mu) * jax.lax.rsqrt(var + _LN_EPS) * gamma_ref[...]

    # Linear(dim -> inner) + GELU. bf16 MXU operands, f32 accumulation + epilogue.
    h = jnp.dot(xn.astype(w1_ref.dtype), w1_ref[...],
                preferred_element_type=jnp.float32) + b1_ref[...]
    # TODO(synk): torch nn.GELU default is the exact erf form; tanh approximation used.
    h = jax.nn.gelu(h, approximate=True)

    # Linear(inner -> dim). Dropout(p=0.0) is a no-op in eval mode.
    o = jnp.dot(h.astype(w2_ref.dtype), w2_ref[...],
                preferred_element_type=jnp.float32) + b2_ref[...]
    o_ref[...] = o.astype(o_ref.dtype)


def _round_up(x, m):
    return pl.cdiv(x, m) * m


def feedforward_forward(x, gamma, w1, b1, w2, b2, *,
                        tile_m=512, compute_dtype=jnp.bfloat16):
    """Fused LayerNorm -> Linear -> GELU -> Linear (FeedForward.forward, eval mode)."""
    B, S, D = x.shape
    inner = w1.shape[1]
    assert w1.shape == (D, inner) and w2.shape == (inner, D)
    assert b1.shape == (inner,) and b2.shape == (D,) and gamma.shape == (D,)
    assert D % 128 == 0 and inner % 128 == 0, "feature dims must be lane aligned"

    out_dtype = x.dtype
    M = B * S

    # Lane/sublane-friendly row tile; clamp for tiny inputs so the common case needs
    # no padding; pad M to a tile multiple only if unavoidable.
    tile_m = max(8, min(_round_up(int(tile_m), 8), _round_up(M, 8)))
    m_pad = _round_up(M, tile_m)
    grid = (m_pad // tile_m,)

    x2 = x.reshape(M, D)                       # keep native dtype for accurate LN stats
    if m_pad != M:
        x2 = jnp.pad(x2, ((0, m_pad - M), (0, 0)))
    w1c = w1.astype(compute_dtype)
    w2c = w2.astype(compute_dtype)
    gamma2 = gamma.reshape(1, D).astype(jnp.float32)
    b1c = b1.reshape(1, inner).astype(jnp.float32)
    b2c = b2.reshape(1, D).astype(jnp.float32)

    x_bytes = jnp.dtype(x2.dtype).itemsize
    c_bytes = jnp.dtype(compute_dtype).itemsize
    o_bytes = jnp.dtype(out_dtype).itemsize

    cost = pl.CostEstimate(
        flops=4 * m_pad * D * inner,                   # two matmuls, 2*M*K*N each
        transcendentals=m_pad * inner,                 # tanh per GELU element
        bytes_accessed=(m_pad * D * (x_bytes + o_bytes)
                        + 2 * D * inner * c_bytes
                        + 4 * (2 * D + inner)),
    )

    vmem_bytes = (
        2 * tile_m * D * x_bytes                       # x tiles (double-buffered)
        + 2 * tile_m * D * o_bytes                     # out tiles (double-buffered)
        + 2 * 2 * D * inner * c_bytes                  # W1 + W2 residency (2 buffers)
        + 2 * 4 * (2 * D + inner)                      # gamma + biases (f32)
        + 4 * tile_m * (2 * D + inner)                 # f32 in-kernel temporaries
        + (16 << 20)                                   # compiler scratch headroom
    )

    out = pl.pallas_call(
        _ffn_kernel,
        out_shape=jax.ShapeDtypeStruct((m_pad, D), out_dtype),
        grid_spec=pltpu.PrefetchScalarGridSpec(
            num_scalar_prefetch=0,
            grid=grid,
            in_specs=[
                pl.BlockSpec((tile_m, D), lambda i: (i, 0)),       # x row tile
                pl.BlockSpec((1, D), lambda i: (0, 0)),            # gamma (resident)
                pl.BlockSpec((D, inner), lambda i: (0, 0)),        # W1 (resident)
                pl.BlockSpec((1, inner), lambda i: (0, 0)),        # b1 (resident)
                pl.BlockSpec((inner, D), lambda i: (0, 0)),        # W2 (resident)
                pl.BlockSpec((1, D), lambda i: (0, 0)),            # b2 (resident)
            ],
            out_specs=pl.BlockSpec((tile_m, D), lambda i: (i, 0)),
        ),
        compiler_params=pltpu.CompilerParams(
            dimension_semantics=("parallel",),
            vmem_limit_bytes=int(min(vmem_bytes, 64 << 20)),
        ),
        cost_estimate=cost,
    )(x2, gamma2, w1c, b1c, w2c, b2c)

    return out[:M].reshape(B, S, D)


def reference_forward(x, gamma, w1, b1, w2, b2, *, compute_dtype=jnp.bfloat16):
    """Pure-JAX reference mirroring the kernel's precision handling."""
    xf = x.astype(jnp.float32)
    mu = jnp.mean(xf, axis=-1, keepdims=True)
    var = jnp.mean(jnp.square(xf - mu), axis=-1, keepdims=True)
    xn = (xf - mu) * jax.lax.rsqrt(var + _LN_EPS) * gamma.astype(jnp.float32)
    h = jnp.dot(xn.astype(compute_dtype), w1.astype(compute_dtype),
                preferred_element_type=jnp.float32) + b1.astype(jnp.float32)
    h = jax.nn.gelu(h, approximate=True)
    o = jnp.dot(h.astype(compute_dtype), w2.astype(compute_dtype),
                preferred_element_type=jnp.float32) + b2.astype(jnp.float32)
    return o.astype(x.dtype)


if __name__ == "__main__":
    # Small video-ViT-like token stream: dim=128, mult=4 -> inner=512.
    B, S, D = 2, 8, 128
    inner = 4 * D

    key = jax.random.PRNGKey(0)
    kx, kg, k1, kb1, k2, kb2 = jax.random.split(key, 6)

    x = jax.random.normal(kx, (B, S, D), dtype=jnp.float32)
    gamma = 1.0 + 0.05 * jax.random.normal(kg, (D,), dtype=jnp.float32)   # LayerNorm gamma
    w1 = jax.random.normal(k1, (D, inner), dtype=jnp.float32) / jnp.sqrt(D)
    b1 = 0.01 * jax.random.normal(kb1, (inner,), dtype=jnp.float32)
    w2 = jax.random.normal(k2, (inner, D), dtype=jnp.float32) / jnp.sqrt(inner)
    b2 = 0.01 * jax.random.normal(kb2, (D,), dtype=jnp.float32)

    out = feedforward_forward(x, gamma, w1, b1, w2, b2)
    out = jax.block_until_ready(out)

    ref = reference_forward(x, gamma, w1, b1, w2, b2)
    assert out.shape == x.shape
    assert jnp.allclose(out, ref, atol=5e-3, rtol=5e-3), "mismatch vs reference"

    print("KERNEL_OK")
</pallas_src>

<mosaic_0001>
module attributes {stable_mosaic.version = 11 : i64} {
  func.func @_ffn_kernel(%arg0: i32, %arg1: memref<16x128xf32, #tpu.memory_space<vmem>>, %arg2: memref<1x128xf32, #tpu.memory_space<vmem>>, %arg3: memref<128x512xbf16, #tpu.memory_space<vmem>>, %arg4: memref<1x512xf32, #tpu.memory_space<vmem>>, %arg5: memref<512x128xbf16, #tpu.memory_space<vmem>>, %arg6: memref<1x128xf32, #tpu.memory_space<vmem>>, %arg7: memref<16x128xf32, #tpu.memory_space<vmem>>) attributes {dimension_semantics = [#tpu.dimension_semantics<parallel>], iteration_bounds = array<i64: 1>, scalar_prefetch = 0 : i64, scratch_operands = 0 : i64, tpu.core_type = #tpu.core_type<tc>, window_params = [{transform_indices = @transform_0, window_bounds = array<i64: 16, 128>}, {pipeline_mode = #tpu.pipeline_mode<synchronous>, transform_indices = @transform_1, window_bounds = array<i64: 1, 128>}, {pipeline_mode = #tpu.pipeline_mode<synchronous>, transform_indices = @transform_2, window_bounds = array<i64: 128, 512>}, {pipeline_mode = #tpu.pipeline_mode<synchronous>, transform_indices = @transform_3, window_bounds = array<i64: 1, 512>}, {pipeline_mode = #tpu.pipeline_mode<synchronous>, transform_indices = @transform_4, window_bounds = array<i64: 512, 128>}, {pipeline_mode = #tpu.pipeline_mode<synchronous>, transform_indices = @transform_5, window_bounds = array<i64: 1, 128>}, {transform_indices = @transform_6, window_bounds = array<i64: 16, 128>}]} {
    %c0 = arith.constant 0 : index
    %c0_0 = arith.constant 0 : index
    %0 = vector.load %arg1[%c0, %c0_0] : memref<16x128xf32, #tpu.memory_space<vmem>>, vector<16x128xf32>
    %cst = arith.constant dense<0.000000e+00> : vector<16xf32>
    %1 = vector.multi_reduction <add>, %0, %cst [1] : vector<16x128xf32> to vector<16xf32>
    %2 = vector.shape_cast %1 : vector<16xf32> to vector<16x1xf32>
    %cst_1 = arith.constant 1.280000e+02 : f32
    %3 = vector.broadcast %cst_1 : f32 to vector<16x1xf32>
    %4 = arith.divf %2, %3 : vector<16x1xf32>
    %5 = vector.broadcast %4 : vector<16x1xf32> to vector<16x128xf32>
    %6 = arith.subf %0, %5 : vector<16x128xf32>
    %7 = arith.mulf %6, %6 : vector<16x128xf32>
    %cst_2 = arith.constant dense<0.000000e+00> : vector<16xf32>
    %8 = vector.multi_reduction <add>, %7, %cst_2 [1] : vector<16x128xf32> to vector<16xf32>
    %9 = vector.shape_cast %8 : vector<16xf32> to vector<16x1xf32>
    %cst_3 = arith.constant 1.280000e+02 : f32
    %10 = vector.broadcast %cst_3 : f32 to vector<16x1xf32>
    %11 = arith.divf %9, %10 : vector<16x1xf32>
    %12 = vector.broadcast %4 : vector<16x1xf32> to vector<16x128xf32>
    %13 = arith.subf %0, %12 : vector<16x128xf32>
    %cst_4 = arith.constant 9.99999974E-6 : f32
    %14 = vector.broadcast %cst_4 : f32 to vector<16x1xf32>
    %15 = arith.addf %11, %14 : vector<16x1xf32>
    %16 = math.rsqrt %15 : vector<16x1xf32>
    %17 = vector.broadcast %16 : vector<16x1xf32> to vector<16x128xf32>
    %18 = arith.mulf %13, %17 : vector<16x128xf32>
    %c0_5 = arith.constant 0 : index
    %c0_6 = arith.constant 0 : index
    %19 = vector.load %arg2[%c0_5, %c0_6] : memref<1x128xf32, #tpu.memory_space<vmem>>, vector<1x128xf32>
    %20 = vector.broadcast %19 : vector<1x128xf32> to vector<16x128xf32>
    %21 = arith.mulf %18, %20 : vector<16x128xf32>
    %22 = arith.truncf %21 : vector<16x128xf32> to vector<16x128xbf16>
    %c0_7 = arith.constant 0 : index
    %c0_8 = arith.constant 0 : index
    %23 = vector.load %arg3[%c0_7, %c0_8] : memref<128x512xbf16, #tpu.memory_space<vmem>>, vector<128x512xbf16>
    %cst_9 = arith.constant dense<0.000000e+00> : vector<16x512xf32>
    %24 = tpu.matmul %22, %23, %cst_9 {dimension_numbers = #tpu.dot_dimension_numbers<[1], [0], [0], [1], [0, 0, 1, 1], [], []>} : vector<16x128xbf16>, vector<128x512xbf16>, vector<16x512xf32> -> vector<16x512xf32>
    %c0_10 = arith.constant 0 : index
    %c0_11 = arith.constant 0 : index
    %25 = vector.load %arg4[%c0_10, %c0_11] : memref<1x512xf32, #tpu.memory_space<vmem>>, vector<1x512xf32>
    %26 = vector.broadcast %25 : vector<1x512xf32> to vector<16x512xf32>
    %27 = arith.addf %24, %26 : vector<16x512xf32>
    %28 = arith.mulf %27, %27 : vector<16x512xf32>
    %29 = arith.mulf %27, %28 : vector<16x512xf32>
    %cst_12 = arith.constant 4.471500e-02 : f32
    %30 = vector.broadcast %cst_12 : f32 to vector<16x512xf32>
    %31 = arith.mulf %30, %29 : vector<16x512xf32>
    %32 = arith.addf %27, %31 : vector<16x512xf32>
    %cst_13 = arith.constant 0.797884583 : f32
    %33 = vector.broadcast %cst_13 : f32 to vector<16x512xf32>
    %34 = arith.mulf %33, %32 : vector<16x512xf32>
    %35 = math.tanh %34 : vector<16x512xf32>
    %cst_14 = arith.constant 1.000000e+00 : f32
    %36 = vector.broadcast %cst_14 : f32 to vector<16x512xf32>
    %37 = arith.addf %36, %35 : vector<16x512xf32>
    %cst_15 = arith.constant 5.000000e-01 : f32
    %38 = vector.broadcast %cst_15 : f32 to vector<16x512xf32>
    %39 = arith.mulf %38, %37 : vector<16x512xf32>
    %40 = arith.mulf %27, %39 : vector<16x512xf32>
    %41 = arith.truncf %40 : vector<16x512xf32> to vector<16x512xbf16>
    %c0_16 = arith.constant 0 : index
    %c0_17 = arith.constant 0 : index
    %42 = vector.load %arg5[%c0_16, %c0_17] : memref<512x128xbf16, #tpu.memory_space<vmem>>, vector<512x128xbf16>
    %cst_18 = arith.constant dense<0.000000e+00> : vector<16x128xf32>
    %43 = tpu.matmul %41, %42, %cst_18 {dimension_numbers = #tpu.dot_dimension_numbers<[1], [0], [0], [1], [0, 0, 1, 1], [], []>} : vector<16x512xbf16>, vector<512x128xbf16>, vector<16x128xf32> -> vector<16x128xf32>
    %c0_19 = arith.constant 0 : index
    %c0_20 = arith.constant 0 : index
    %44 = vector.load %arg6[%c0_19, %c0_20] : memref<1x128xf32, #tpu.memory_space<vmem>>, vector<1x128xf32>
    %45 = vector.broadcast %44 : vector<1x128xf32> to vector<16x128xf32>
    %46 = arith.addf %43, %45 : vector<16x128xf32>
    %c0_21 = arith.constant 0 : index
    %c0_22 = arith.constant 0 : index
    %47 = vector.load %arg7[%c0_21, %c0_22] : memref<16x128xf32, #tpu.memory_space<vmem>>, vector<16x128xf32>
    tpu.vector_store %arg7[%c0_21, %c0_22], %46 {strides = array<i32>} : memref<16x128xf32, #tpu.memory_space<vmem>>, vector<16x128xf32>,
    return
  }
  func.func @transform_0(%arg0: i32) -> (i32, i32) {
    %c0_i32 = arith.constant 0 : i32
    %c0_i32_0 = arith.constant 0 : i32
    return %arg0, %c0_i32 : i32, i32
  }
  func.func @transform_1(%arg0: i32) -> (i32, i32) {
    %c0_i32 = arith.constant 0 : i32
    %c0_i32_0 = arith.constant 0 : i32
    %c0_i32_1 = arith.constant 0 : i32
    return %c0_i32, %c0_i32_0 : i32, i32
  }
  func.func @transform_2(%arg0: i32) -> (i32, i32) {
    %c0_i32 = arith.constant 0 : i32
    %c0_i32_0 = arith.constant 0 : i32
    %c0_i32_1 = arith.constant 0 : i32
    return %c0_i32, %c0_i32_0 : i32, i32
  }
  func.func @transform_3(%arg0: i32) -> (i32, i32) {
    %c0_i32 = arith.constant 0 : i32
    %c0_i32_0 = arith.constant 0 : i32
    %c0_i32_1 = arith.constant 0 : i32
    return %c0_i32, %c0_i32_0 : i32, i32
  }
  func.func @transform_4(%arg0: i32) -> (i32, i32) {
    %c0_i32 = arith.constant 0 : i32
    %c0_i32_0 = arith.constant 0 : i32
    %c0_i32_1 = arith.constant 0 : i32
    return %c0_i32, %c0_i32_0 : i32, i32
  }
  func.func @transform_5(%arg0: i32) -> (i32, i32) {
    %c0_i32 = arith.constant 0 : i32
    %c0_i32_0 = arith.constant 0 : i32
    %c0_i32_1 = arith.constant 0 : i32
    return %c0_i32, %c0_i32_0 : i32, i32
  }
  func.func @transform_6(%arg0: i32) -> (i32, i32) {
    %c0_i32 = arith.constant 0 : i32
    %c0_i32_0 = arith.constant 0 : i32
    return %arg0, %c0_i32 : i32, i32
  }
}

</mosaic_0001>

<llo_original>
// kernel: tpu_custom_call.1
$region0: #{tpu_custom_call.1}
  #allocation0 [shape = 'u32[]', space=smem, size = 0x4, offset = 0x4, fixed_abs, tag = 'smem constant byte address 0x4 - core index']
  #allocation1 [shape = 'u32[144,128]{1,0:T(1,128)}', space=vmem, size = 0x12000, scoped, tag = 'internal scratch']
  %s0 = inlined_call_operand.hbm [shape: f32[16,128], index: 0, kind: input, shape index: {}]
  %s1 = inlined_call_operand.vmem [shape: f32[1,128], index: 1, kind: input, shape index: {}]
  %s2 = inlined_call_operand.hbm [shape: bf16[128,512], index: 2, kind: input, shape index: {}]
  %s3 = inlined_call_operand.vmem [shape: f32[1,512], index: 3, kind: input, shape index: {}]
  %s4 = inlined_call_operand.hbm [shape: bf16[512,128], index: 4, kind: input, shape index: {}]
  %s5 = inlined_call_operand.vmem [shape: f32[1,128], index: 5, kind: input, shape index: {}]
  %s6 = inlined_call_operand.hbm [shape: f32[16,128], index: 6, kind: output, shape index: {}]
  %s7 = sld [smem:[#allocation0]]
  $region46: #{tpu_custom_call.1} parent=0
    _
  %s9 = ssub.s32 1, %s7
  %s10 = scalar_select 0, %s9, %s7
  $region1: #{tpu_custom_call.1} parent=0
    #allocation2 [shape = 'u8[8192]{0}', space=vmem, size = 0x2000, scoped, tag = 'input window, operand 0, single buffered']
    #allocation3 [shape = 's32[1]{0}', space=sflag, size = 0x4, scoped, tag = 'scoped memory for tpu_custom_call.1']
    #allocation4 [shape = 's32[1]{0}', space=sflag, size = 0x4, scoped, tag = 'scoped memory for tpu_custom_call.1']
    #allocation5 [shape = 'u8[131072]{0}', space=vmem, size = 0x20000, scoped, tag = 'input window, operand 2, single buffered']
    #allocation6 [shape = 's32[1]{0}', space=sflag, size = 0x4, scoped, tag = 'scoped memory for tpu_custom_call.1']
    #allocation7 [shape = 'u8[131072]{0}', space=vmem, size = 0x20000, scoped, tag = 'input window, operand 4, single buffered']
    #allocation8 [shape = 'u8[8192]{0}', space=vmem, size = 0x2000, scoped, tag = 'output window, operand 0, single buffered']
    %11 = vsyncpa [#allocation3], 0
    %12 = vsyncpa [#allocation6], 0
    %13 = vsyncpa [#allocation4], 0
    // Predicated region
    $region2: #{tpu_custom_call.1} parent=1 // pred_check
      _
    $region3: #{tpu_custom_call.1} parent=1 // pred_check_branch
      %15 = sbr.rel (0) target = $region5
    $region4: #{tpu_custom_call.1} parent=1 // pred_region
      %s17 = ssub.s32 256, 256
      %18 = vsyncadd [#allocation3], %s17
      %s19 = sshll.u32 [#allocation2], 4
      %s20 = int_to_ptr.vmem [resolvable:$true] %s19
      %25 = dma.hbm_to_vmem [thread:$0]  %s0, 256, %s20, [#allocation3], 128, 128, 8
    $region5: #{tpu_custom_call.1} parent=1 // pred_fallthru
      _
    // Predicated region
    $region6: #{tpu_custom_call.1} parent=1 // pred_check
      _
    $region7: #{tpu_custom_call.1} parent=1 // pred_check_branch
      %27 = sbr.rel (0) target = $region9
    $region8: #{tpu_custom_call.1} parent=1 // pred_region
      _
    $region9: #{tpu_custom_call.1} parent=1 // pred_fallthru
      _
    // Predicated region
    $region10: #{tpu_custom_call.1} parent=1 // pred_check
      _
    $region11: #{tpu_custom_call.1} parent=1 // pred_check_branch
      %29 = sbr.rel (0) target = $region13
    $region12: #{tpu_custom_call.1} parent=1 // pred_region
      %s31 = ssub.s32 4096, 4096
      %32 = vsyncadd [#allocation6], %s31
      %s33 = sshll.u32 [#allocation5], 4
      %s34 = int_to_ptr.vmem [resolvable:$true] %s33
      %39 = dma.hbm_to_vmem [thread:$0]  %s2, 4096, %s34, [#allocation6], 256, 256, 16
    $region13: #{tpu_custom_call.1} parent=1 // pred_fallthru
      _
    // Predicated region
    $region14: #{tpu_custom_call.1} parent=1 // pred_check
      _
    $region15: #{tpu_custom_call.1} parent=1 // pred_check_branch
      %41 = sbr.rel (0) target = $region17
    $region16: #{tpu_custom_call.1} parent=1 // pred_region
      _
    $region17: #{tpu_custom_call.1} parent=1 // pred_fallthru
      _
    // Predicated region
    $region18: #{tpu_custom_call.1} parent=1 // pred_check
      _
    $region19: #{tpu_custom_call.1} parent=1 // pred_check_branch
      %43 = sbr.rel (0) target = $region21
    $region20: #{tpu_custom_call.1} parent=1 // pred_region
      %s45 = ssub.s32 4096, 4096
      %46 = vsyncadd [#allocation6], %s45
      %s47 = sshll.u32 [#allocation7], 4
      %s48 = int_to_ptr.vmem [resolvable:$true] %s47
      %53 = dma.hbm_to_vmem [thread:$0]  %s4, 4096, %s48, [#allocation6], 64, 64, 4
    $region21: #{tpu_custom_call.1} parent=1 // pred_fallthru
      _
    // Predicated region
    $region22: #{tpu_custom_call.1} parent=1 // pred_check
      _
    $region23: #{tpu_custom_call.1} parent=1 // pred_check_branch
      %55 = sbr.rel (0) target = $region25
    $region24: #{tpu_custom_call.1} parent=1 // pred_region
      _
    $region25: #{tpu_custom_call.1} parent=1 // pred_fallthru
      _
    // Predicated region
    $region26: #{tpu_custom_call.1} parent=1 // pred_check
      _
    $region27: #{tpu_custom_call.1} parent=1 // pred_check_branch
      %57 = sbr.rel (0) target = $region29
    $region28: #{tpu_custom_call.1} parent=1 // pred_region
      %58 = dma.done [#allocation3], 256
    $region29: #{tpu_custom_call.1} parent=1 // pred_fallthru
      _
    // Predicated region
    $region30: #{tpu_custom_call.1} parent=1 // pred_check
      _
    $region31: #{tpu_custom_call.1} parent=1 // pred_check_branch
      %60 = sbr.rel (0) target = $region33
    $region32: #{tpu_custom_call.1} parent=1 // pred_region
      %61 = dma.done [#allocation6], 4096
    $region33: #{tpu_custom_call.1} parent=1 // pred_fallthru
      _
    // Predicated region
    $region34: #{tpu_custom_call.1} parent=1 // pred_check
      _
    $region35: #{tpu_custom_call.1} parent=1 // pred_check_branch
      %63 = sbr.rel (0) target = $region37
    $region36: #{tpu_custom_call.1} parent=1 // pred_region
      %64 = dma.done [#allocation6], 4096
    $region37: #{tpu_custom_call.1} parent=1 // pred_fallthru
      _
    %v66 = vld [vmem:[#allocation2] sm:$0xff]
    %v67 = vld [vmem:[#allocation2 + $0x8] sm:$0xff]
    %68 = vadd.xlane.f32.xlu0 %v66
    %v69 = vpop.xlane.xlu0 %68
    %70 = vadd.xlane.f32.xlu0 %v67
    %v71 = vpop.xlane.xlu0 %70
    %v72 = vrcp.pop 128.0
    %v73 = vmul.f32 %v69, %v72
    %v74 = vmul.f32 %v71, %v72
    %v75 = vsub.f32 %v66, %v73
    %v76 = vsub.f32 %v67, %v74
    %v77 = vmul.f32 %v75, %v75
    %v78 = vmul.f32 %v76, %v76
    %79 = vadd.xlane.f32.xlu0 %v77
    %v80 = vpop.xlane.xlu0 %79
    %81 = vadd.xlane.f32.xlu0 %v78
    %v82 = vpop.xlane.xlu0 %81
    %v83 = vmul.f32 %v80, %v72
    %v84 = vmul.f32 %v82, %v72
    %v85 = vadd.f32 %v83, 1e-05
    %v86 = vadd.f32 %v84, 1e-05
    %v87 = vrsqrt.pop %v85
    %v88 = vrsqrt.pop %v86
    %v89 = vmul.f32 %v75, %v87
    %v90 = vmul.f32 %v76, %v88
    %v91 = vld [vmem:[%s1] sm:$0x1]
    %v93 = vlaneseq
    %v94 = vshrl.u32 %v93, 7
    %v95 = vsub.s32 0, %v94
    %v96 = vrot.slane %v91, %v95
    %v98 = vmul.f32 %v89, %v96
    %v99 = vmul.f32 %v90, %v96
    %v100 = vpack.c.bf16 %v99, %v98
    %v101 = vld [vmem:[#allocation5] sm:$0xff]
    %v102 = vld [vmem:[#allocation5 + $0x8] sm:$0xff]
    %v103 = vld [vmem:[#allocation5 + $0x10] sm:$0xff]
    %v104 = vld [vmem:[#allocation5 + $0x18] sm:$0xff]
    %v105 = vld [vmem:[#allocation5 + $0x20] sm:$0xff]
    %v106 = vld [vmem:[#allocation5 + $0x28] sm:$0xff]
    %v107 = vld [vmem:[#allocation5 + $0x30] sm:$0xff]
    %v108 = vld [vmem:[#allocation5 + $0x38] sm:$0xff]
    %v109 = vld [vmem:[#allocation5 + $0x40] sm:$0xff]
    %v110 = vld [vmem:[#allocation5 + $0x48] sm:$0xff]
    %v111 = vld [vmem:[#allocation5 + $0x50] sm:$0xff]
    %v112 = vld [vmem:[#allocation5 + $0x58] sm:$0xff]
    %v113 = vld [vmem:[#allocation5 + $0x60] sm:$0xff]
    %v114 = vld [vmem:[#allocation5 + $0x68] sm:$0xff]
    %v115 = vld [vmem:[#allocation5 + $0x70] sm:$0xff]
    %v116 = vld [vmem:[#allocation5 + $0x78] sm:$0xff]
    %v117 = vld [vmem:[#allocation5 + $0x80] sm:$0xff]
    %v118 = vld [vmem:[#allocation5 + $0x88] sm:$0xff]
    %v119 = vld [vmem:[#allocation5 + $0x90] sm:$0xff]
    %v120 = vld [vmem:[#allocation5 + $0x98] sm:$0xff]
    %v121 = vld [vmem:[#allocation5 + $0xa0] sm:$0xff]
    %v122 = vld [vmem:[#allocation5 + $0xa8] sm:$0xff]
    %v123 = vld [vmem:[#allocation5 + $0xb0] sm:$0xff]
    %v124 = vld [vmem:[#allocation5 + $0xb8] sm:$0xff]
    %v125 = vld [vmem:[#allocation5 + $0xc0] sm:$0xff]
    %v126 = vld [vmem:[#allocation5 + $0xc8] sm:$0xff]
    %v127 = vld [vmem:[#allocation5 + $0xd0] sm:$0xff]
    %v128 = vld [vmem:[#allocation5 + $0xd8] sm:$0xff]
    %v129 = vld [vmem:[#allocation5 + $0xe0] sm:$0xff]
    %v130 = vld [vmem:[#allocation5 + $0xe8] sm:$0xff]
    %v131 = vld [vmem:[#allocation5 + $0xf0] sm:$0xff]
    %v132 = vld [vmem:[#allocation5 + $0xf8] sm:$0xff]
    %v133 = vld [vmem:[%s3] sm:$0xf]
    %v135 = vlaneseq
    %v136 = vshrl.u32 %v135, 7
    %v137 = vsub.s32 0, %v136
    %v138 = vrot.slane %v133, %v137
    %v139 = vlaneseq
    %v140 = vshrl.u32 %v139, 7
    %v141 = vsub.s32 1, %v140
    %v142 = vrot.slane %v133, %v141
    %v143 = vlaneseq
    %v144 = vshrl.u32 %v143, 7
    %v145 = vsub.s32 2, %v144
    %v146 = vrot.slane %v133, %v145
    %v147 = vlaneseq
    %v148 = vshrl.u32 %v147, 7
    %v149 = vsub.s32 3, %v148
    %v150 = vrot.slane %v133, %v149
    %v187 = vunpack.c.l.b16 %v101
    %v188 = vunpack.c.h.b16 %v101
    %v189 = vunpack.c.l.b16 %v102
    %v190 = vunpack.c.h.b16 %v102
    %v191 = vunpack.c.l.b16 %v103
    %v192 = vunpack.c.h.b16 %v103
    %v193 = vunpack.c.l.b16 %v104
    %v194 = vunpack.c.h.b16 %v104
    %v195 = vunpack.c.l.b16 %v105
    %v196 = vunpack.c.h.b16 %v105
    %v197 = vunpack.c.l.b16 %v106
    %v198 = vunpack.c.h.b16 %v106
    %v199 = vunpack.c.l.b16 %v107
    %v200 = vunpack.c.h.b16 %v107
    %v201 = vunpack.c.l.b16 %v108
    %v202 = vunpack.c.h.b16 %v108
    %v203 = vunpack.c.l.b16 %v109
    %v204 = vunpack.c.h.b16 %v109
    %v205 = vunpack.c.l.b16 %v110
    %v206 = vunpack.c.h.b16 %v110
    %v207 = vunpack.c.l.b16 %v111
    %v208 = vunpack.c.h.b16 %v111
    %v209 = vunpack.c.l.b16 %v112
    %v210 = vunpack.c.h.b16 %v112
    %v211 = vunpack.c.l.b16 %v113
    %v212 = vunpack.c.h.b16 %v113
    %v213 = vunpack.c.l.b16 %v114
    %v214 = vunpack.c.h.b16 %v114
    %v215 = vunpack.c.l.b16 %v115
    %v216 = vunpack.c.h.b16 %v115
    %v217 = vunpack.c.l.b16 %v116
    %v218 = vunpack.c.h.b16 %v116
    %v219 = vunpack.c.l.b16 %v117
    %v220 = vunpack.c.h.b16 %v117
    %v221 = vunpack.c.l.b16 %v118
    %v222 = vunpack.c.h.b16 %v118
    %v223 = vunpack.c.l.b16 %v119
    %v224 = vunpack.c.h.b16 %v119
    %v225 = vunpack.c.l.b16 %v120
    %v226 = vunpack.c.h.b16 %v120
    %v227 = vunpack.c.l.b16 %v121
    %v228 = vunpack.c.h.b16 %v121
    %v229 = vunpack.c.l.b16 %v122
    %v230 = vunpack.c.h.b16 %v122
    %v231 = vunpack.c.l.b16 %v123
    %v232 = vunpack.c.h.b16 %v123
    %v233 = vunpack.c.l.b16 %v124
    %v234 = vunpack.c.h.b16 %v124
    %v235 = vunpack.c.l.b16 %v125
    %v236 = vunpack.c.h.b16 %v125
    %v237 = vunpack.c.l.b16 %v126
    %v238 = vunpack.c.h.b16 %v126
    %v239 = vunpack.c.l.b16 %v127
    %v240 = vunpack.c.h.b16 %v127
    %v241 = vunpack.c.l.b16 %v128
    %v242 = vunpack.c.h.b16 %v128
    %v243 = vunpack.c.l.b16 %v129
    %v244 = vunpack.c.h.b16 %v129
    %v245 = vunpack.c.l.b16 %v130
    %v246 = vunpack.c.h.b16 %v130
    %v247 = vunpack.c.l.b16 %v131
    %v248 = vunpack.c.h.b16 %v131
    %v249 = vunpack.c.l.b16 %v132
    %v250 = vunpack.c.h.b16 %v132
    %v251 = vpack.c.b16 %v191, %v187
    %v252 = vpack.c.b16 %v192, %v188
    %v253 = vpack.c.b16 %v193, %v189
    %v254 = vpack.c.b16 %v194, %v190
    %v255 = vpack.c.b16 %v199, %v195
    %v256 = vpack.c.b16 %v200, %v196
    %v257 = vpack.c.b16 %v201, %v197
    %v258 = vpack.c.b16 %v202, %v198
    %v259 = vpack.c.b16 %v207, %v203
    %v260 = vpack.c.b16 %v208, %v204
    %v261 = vpack.c.b16 %v209, %v205
    %v262 = vpack.c.b16 %v210, %v206
    %v263 = vpack.c.b16 %v215, %v211
    %v264 = vpack.c.b16 %v216, %v212
    %v265 = vpack.c.b16 %v217, %v213
    %v266 = vpack.c.b16 %v218, %v214
    %v267 = vpack.c.b16 %v223, %v219
    %v268 = vpack.c.b16 %v224, %v220
    %v269 = vpack.c.b16 %v225, %v221
    %v270 = vpack.c.b16 %v226, %v222
    %v271 = vpack.c.b16 %v231, %v227
    %v272 = vpack.c.b16 %v232, %v228
    %v273 = vpack.c.b16 %v233, %v229
    %v274 = vpack.c.b16 %v234, %v230
    %v275 = vpack.c.b16 %v239, %v235
    %v276 = vpack.c.b16 %v240, %v236
    %v277 = vpack.c.b16 %v241, %v237
    %v278 = vpack.c.b16 %v242, %v238
    %v279 = vpack.c.b16 %v247, %v243
    %v280 = vpack.c.b16 %v248, %v244
    %v281 = vpack.c.b16 %v249, %v245
    %v282 = vpack.c.b16 %v250, %v246
    %315 = vmatprep.subr.bf16.mxu0 %v280
    %316 = vmatpush1.bf16.msra.mxu0 %v279
    %317 = vmatprep.subr.bf16.mxu0 %v276
    %318 = vmatpush1.bf16.msra.mxu0 %v275
    %319 = vmatprep.subr.bf16.mxu0 %v272
    %320 = vmatpush1.bf16.msra.mxu0 %v271
    %321 = vmatprep.subr.bf16.mxu0 %v268
    %322 = vmatpush1.bf16.msra.mxu0 %v267
    %323 = vmatprep.subr.bf16.mxu0 %v264
    %324 = vmatpush1.bf16.msra.mxu0 %v263
    %325 = vmatprep.subr.bf16.mxu0 %v260
    %326 = vmatpush1.bf16.msra.mxu0 %v259
    %327 = vmatprep.subr.bf16.mxu0 %v256
    %328 = vmatpush1.bf16.msra.mxu0 %v255
    %329 = vmatprep.subr.bf16.mxu0 %v252
    %330 = vmatpush1.bf16.msra.mxu0 %v251
    %331 = vmatprep.subr.bf16.mxu0 0
    %332 = vmatpush2.bf16.msra.mxu0 0
    %333 = vmatprep.subr.bf16.mxu0 0
    %334 = vmatpush2.bf16.msra.mxu0 0
    %335 = vmatprep.subr.bf16.mxu0 0
    %336 = vmatpush2.bf16.msra.mxu0 0
    %337 = vmatprep.subr.bf16.mxu0 0
    %338 = vmatpush2.bf16.msra.mxu0 0
    %339 = vmatprep.subr.bf16.mxu0 0
    %340 = vmatpush2.bf16.msra.mxu0 0
    %341 = vmatprep.subr.bf16.mxu0 0
    %342 = vmatpush2.bf16.msra.mxu0 0
    %343 = vmatprep.subr.bf16.mxu0 0
    %344 = vmatpush2.bf16.msra.mxu0 0
    %345 = vmatprep.subr.bf16.mxu0 0
    %346 = vmatpush2.bf16.msra.mxu0 0
    %347 = vmatprep.mubr.bf16.mxu0 0
    %348 = vmatmul.mubr.bf16.gmra.mxu0 %v100
    %v349 = vpop.f32.mrf.mxu0
    %v350 = vadd.f32 %v138, %v349
    %v351 = vpop.f32.mrf.mxu0
    %v352 = vadd.f32 %v142, %v351
    %v353 = vpop.f32.mrf.mxu0
    %v354 = vadd.f32 %v138, %v353
    %v355 = vpop.f32.mrf.mxu0
    %v356 = vadd.f32 %v142, %v355
    %357 = vdwg.mxu0
    %358 = vmatprep.subr.bf16.mxu0 %v282
    %359 = vmatpush1.bf16.msra.mxu0 %v281
    %360 = vmatprep.subr.bf16.mxu0 %v278
    %361 = vmatpush1.bf16.msra.mxu0 %v277
    %362 = vmatprep.subr.bf16.mxu0 %v274
    %363 = vmatpush1.bf16.msra.mxu0 %v273
    %364 = vmatprep.subr.bf16.mxu0 %v270
    %365 = vmatpush1.bf16.msra.mxu0 %v269
    %366 = vmatprep.subr.bf16.mxu0 %v266
    %367 = vmatpush1.bf16.msra.mxu0 %v265
    %368 = vmatprep.subr.bf16.mxu0 %v262
    %369 = vmatpush1.bf16.msra.mxu0 %v261
    %370 = vmatprep.subr.bf16.mxu0 %v258
    %371 = vmatpush1.bf16.msra.mxu0 %v257
    %372 = vmatprep.subr.bf16.mxu0 %v254
    %373 = vmatpush1.bf16.msra.mxu0 %v253
    %374 = vmatprep.subr.bf16.mxu0 0
    %375 = vmatpush2.bf16.msra.mxu0 0
    %376 = vmatprep.subr.bf16.mxu0 0
    %377 = vmatpush2.bf16.msra.mxu0 0
    %378 = vmatprep.subr.bf16.mxu0 0
    %379 = vmatpush2.bf16.msra.mxu0 0
    %380 = vmatprep.subr.bf16.mxu0 0
    %381 = vmatpush2.bf16.msra.mxu0 0
    %382 = vmatprep.subr.bf16.mxu0 0
    %383 = vmatpush2.bf16.msra.mxu0 0
    %384 = vmatprep.subr.bf16.mxu0 0
    %385 = vmatpush2.bf16.msra.mxu0 0
    %386 = vmatprep.subr.bf16.mxu0 0
    %387 = vmatpush2.bf16.msra.mxu0 0
    %388 = vmatprep.subr.bf16.mxu0 0
    %389 = vmatpush2.bf16.msra.mxu0 0
    %390 = vmatprep.mubr.bf16.mxu0 0
    %391 = vmatmul.mubr.bf16.gmra.mxu0 %v100
    %v392 = vpop.f32.mrf.mxu0
    %v393 = vadd.f32 %v146, %v392
    %v394 = vpop.f32.mrf.mxu0
    %v395 = vadd.f32 %v150, %v394
    %v396 = vpop.f32.mrf.mxu0
    %v397 = vadd.f32 %v146, %v396
    %v398 = vpop.f32.mrf.mxu0
    %v399 = vadd.f32 %v150, %v398
    %400 = vdwg.mxu0
    %v401 = vmul.f32 %v350, %v350
    %v402 = vmul.f32 %v352, %v352
    %v403 = vmul.f32 %v393, %v393
    %v404 = vmul.f32 %v395, %v395
    %v405 = vmul.f32 %v354, %v354
    %v406 = vmul.f32 %v356, %v356
    %v407 = vmul.f32 %v397, %v397
    %v408 = vmul.f32 %v399, %v399
    %v409 = vmul.f32 %v350, %v401
    %v410 = vmul.f32 %v352, %v402
    %v411 = vmul.f32 %v393, %v403
    %v412 = vmul.f32 %v395, %v404
    %v413 = vmul.f32 %v354, %v405
    %v414 = vmul.f32 %v356, %v406
    %v415 = vmul.f32 %v397, %v407
    %v416 = vmul.f32 %v399, %v408
    %v417 = vmul.f32 %v409, 0.044715
    %v418 = vmul.f32 %v410, 0.044715
    %v419 = vmul.f32 %v411, 0.044715
    %v420 = vmul.f32 %v412, 0.044715
    %v421 = vmul.f32 %v413, 0.044715
    %v422 = vmul.f32 %v414, 0.044715
    %v423 = vmul.f32 %v415, 0.044715
    %v424 = vmul.f32 %v416, 0.044715
    %v425 = vadd.f32 %v350, %v417
    %v426 = vadd.f32 %v352, %v418
    %v427 = vadd.f32 %v393, %v419
    %v428 = vadd.f32 %v395, %v420
    %v429 = vadd.f32 %v354, %v421
    %v430 = vadd.f32 %v356, %v422
    %v431 = vadd.f32 %v397, %v423
    %v432 = vadd.f32 %v399, %v424
    %v433 = vmul.f32 %v425, 0.7978846
    %v434 = vmul.f32 %v426, 0.7978846
    %v435 = vmul.f32 %v427, 0.7978846
    %v436 = vmul.f32 %v428, 0.7978846
    %v437 = vmul.f32 %v429, 0.7978846
    %v438 = vmul.f32 %v430, 0.7978846
    %v439 = vmul.f32 %v431, 0.7978846
    %v440 = vmul.f32 %v432, 0.7978846
    %v441 = vtanh.pop %v433
    %v442 = vtanh.pop %v434
    %v443 = vtanh.pop %v435
    %v444 = vtanh.pop %v436
    %v445 = vtanh.pop %v437
    %v446 = vtanh.pop %v438
    %v447 = vtanh.pop %v439
    %v448 = vtanh.pop %v440
    %v449 = vadd.f32 %v441, 1.0
    %v450 = vadd.f32 %v442, 1.0
    %v451 = vadd.f32 %v443, 1.0
    %v452 = vadd.f32 %v444, 1.0
    %v453 = vadd.f32 %v445, 1.0
    %v454 = vadd.f32 %v446, 1.0
    %v455 = vadd.f32 %v447, 1.0
    %v456 = vadd.f32 %v448, 1.0
    %v457 = vmul.f32 %v449, 0.5
    %v458 = vmul.f32 %v450, 0.5
    %v459 = vmul.f32 %v451, 0.5
    %v460 = vmul.f32 %v452, 0.5
    %v461 = vmul.f32 %v453, 0.5
    %v462 = vmul.f32 %v454, 0.5
    %v463 = vmul.f32 %v455, 0.5
    %v464 = vmul.f32 %v456, 0.5
    %v465 = vmul.f32 %v350, %v457
    %v466 = vmul.f32 %v352, %v458
    %v467 = vmul.f32 %v393, %v459
    %v468 = vmul.f32 %v395, %v460
    %v469 = vmul.f32 %v354, %v461
    %v470 = vmul.f32 %v356, %v462
    %v471 = vmul.f32 %v397, %v463
    %v472 = vmul.f32 %v399, %v464
    %v473 = vpack.c.bf16 %v469, %v465
    %v474 = vpack.c.bf16 %v470, %v466
    %v475 = vpack.c.bf16 %v471, %v467
    %v476 = vpack.c.bf16 %v472, %v468
    %v477 = vld [vmem:[#allocation7] sm:$0xf]
    %v478 = vld [vmem:[#allocation7 + $0x4] sm:$0xf]
    %v479 = vld [vmem:[#allocation7 + $0x8] sm:$0xf]
    %v480 = vld [vmem:[#allocation7 + $0xc] sm:$0xf]
    %v481 = vld [vmem:[#allocation7 + $0x10] sm:$0xf]
    %v482 = vld [vmem:[#allocation7 + $0x14] sm:$0xf]
    %v483 = vld [vmem:[#allocation7 + $0x18] sm:$0xf]
    %v484 = vld [vmem:[#allocation7 + $0x1c] sm:$0xf]
    %v485 = vld [vmem:[#allocation7 + $0x20] sm:$0xf]
    %v486 = vld [vmem:[#allocation7 + $0x24] sm:$0xf]
    %v487 = vld [vmem:[#allocation7 + $0x28] sm:$0xf]
    %v488 = vld [vmem:[#allocation7 + $0x2c] sm:$0xf]
    %v489 = vld [vmem:[#allocation7 + $0x30] sm:$0xf]
    %v490 = vld [vmem:[#allocation7 + $0x34] sm:$0xf]
    %v491 = vld [vmem:[#allocation7 + $0x38] sm:$0xf]
    %v492 = vld [vmem:[#allocation7 + $0x3c] sm:$0xf]
    %v493 = vld [vmem:[#allocation7 + $0x40] sm:$0xf]
    %v494 = vld [vmem:[#allocation7 + $0x44] sm:$0xf]
    %v495 = vld [vmem:[#allocation7 + $0x48] sm:$0xf]
    %v496 = vld [vmem:[#allocation7 + $0x4c] sm:$0xf]
    %v497 = vld [vmem:[#allocation7 + $0x50] sm:$0xf]
    %v498 = vld [vmem:[#allocation7 + $0x54] sm:$0xf]
    %v499 = vld [vmem:[#allocation7 + $0x58] sm:$0xf]
    %v500 = vld [vmem:[#allocation7 + $0x5c] sm:$0xf]
    %v501 = vld [vmem:[#allocation7 + $0x60] sm:$0xf]
    %v502 = vld [vmem:[#allocation7 + $0x64] sm:$0xf]
    %v503 = vld [vmem:[#allocation7 + $0x68] sm:$0xf]
    %v504 = vld [vmem:[#allocation7 + $0x6c] sm:$0xf]
    %v505 = vld [vmem:[#allocation7 + $0x70] sm:$0xf]
    %v506 = vld [vmem:[#allocation7 + $0x74] sm:$0xf]
    %v507 = vld [vmem:[#allocation7 + $0x78] sm:$0xf]
    %v508 = vld [vmem:[#allocation7 + $0x7c] sm:$0xf]
    %v509 = vld [vmem:[#allocation7 + $0x80] sm:$0xf]
    %v510 = vld [vmem:[#allocation7 + $0x84] sm:$0xf]
    %v511 = vld [vmem:[#allocation7 + $0x88] sm:$0xf]
    %v512 = vld [vmem:[#allocation7 + $0x8c] sm:$0xf]
    %v513 = vld [vmem:[#allocation7 + $0x90] sm:$0xf]
    %v514 = vld [vmem:[#allocation7 + $0x94] sm:$0xf]
    %v515 = vld [vmem:[#allocation7 + $0x98] sm:$0xf]
    %v516 = vld [vmem:[#allocation7 + $0x9c] sm:$0xf]
    %v517 = vld [vmem:[#allocation7 + $0xa0] sm:$0xf]
    %v518 = vld [vmem:[#allocation7 + $0xa4] sm:$0xf]
    %v519 = vld [vmem:[#allocation7 + $0xa8] sm:$0xf]
    %v520 = vld [vmem:[#allocation7 + $0xac] sm:$0xf]
    %v521 = vld [vmem:[#allocation7 + $0xb0] sm:$0xf]
    %v522 = vld [vmem:[#allocation7 + $0xb4] sm:$0xf]
    %v523 = vld [vmem:[#allocation7 + $0xb8] sm:$0xf]
    %v524 = vld [vmem:[#allocation7 + $0xbc] sm:$0xf]
    %v525 = vld [vmem:[#allocation7 + $0xc0] sm:$0xf]
    %v526 = vld [vmem:[#allocation7 + $0xc4] sm:$0xf]
    %v527 = vld [vmem:[#allocation7 + $0xc8] sm:$0xf]
    %v528 = vld [vmem:[#allocation7 + $0xcc] sm:$0xf]
    %v529 = vld [vmem:[#allocation7 + $0xd0] sm:$0xf]
    %v530 = vld [vmem:[#allocation7 + $0xd4] sm:$0xf]
    %v531 = vld [vmem:[#allocation7 + $0xd8] sm:$0xf]
    %v532 = vld [vmem:[#allocation7 + $0xdc] sm:$0xf]
    %v533 = vld [vmem:[#allocation7 + $0xe0] sm:$0xf]
    %v534 = vld [vmem:[#allocation7 + $0xe4] sm:$0xf]
    %v535 = vld [vmem:[#allocation7 + $0xe8] sm:$0xf]
    %v536 = vld [vmem:[#allocation7 + $0xec] sm:$0xf]
    %v537 = vld [vmem:[#allocation7 + $0xf0] sm:$0xf]
    %v538 = vld [vmem:[#allocation7 + $0xf4] sm:$0xf]
    %v539 = vld [vmem:[#allocation7 + $0xf8] sm:$0xf]
    %v540 = vld [vmem:[#allocation7 + $0xfc] sm:$0xf]
    %v541 = vld [vmem:[%s5] sm:$0x1]
    %v543 = vlaneseq
    %v544 = vshrl.u32 %v543, 7
    %v545 = vsub.s32 0, %v544
    %v546 = vrot.slane %v541, %v545
    %v612 = vunpack.c.l.b16 %v477
    %v613 = vunpack.c.l.b16 %v478
    %v614 = vunpack.c.l.b16 %v479
    %v615 = vunpack.c.l.b16 %v480
    %v616 = vunpack.c.l.b16 %v481
    %v617 = vunpack.c.l.b16 %v482
    %v618 = vunpack.c.l.b16 %v483
    %v619 = vunpack.c.l.b16 %v484
    %v620 = vunpack.c.l.b16 %v485
    %v621 = vunpack.c.l.b16 %v486
    %v622 = vunpack.c.l.b16 %v487
    %v623 = vunpack.c.l.b16 %v488
    %v624 = vunpack.c.l.b16 %v489
    %v625 = vunpack.c.l.b16 %v490
    %v626 = vunpack.c.l.b16 %v491
    %v627 = vunpack.c.l.b16 %v492
    %v628 = vunpack.c.l.b16 %v493
    %v629 = vunpack.c.l.b16 %v494
    %v630 = vunpack.c.l.b16 %v495
    %v631 = vunpack.c.l.b16 %v496
    %v632 = vunpack.c.l.b16 %v497
    %v633 = vunpack.c.l.b16 %v498
    %v634 = vunpack.c.l.b16 %v499
    %v635 = vunpack.c.l.b16 %v500
    %v636 = vunpack.c.l.b16 %v501
    %v637 = vunpack.c.l.b16 %v502
    %v638 = vunpack.c.l.b16 %v503
    %v639 = vunpack.c.l.b16 %v504
    %v640 = vunpack.c.l.b16 %v505
    %v641 = vunpack.c.l.b16 %v506
    %v642 = vunpack.c.l.b16 %v507
    %v643 = vunpack.c.l.b16 %v508
    %v644 = vunpack.c.l.b16 %v509
    %v645 = vunpack.c.l.b16 %v510
    %v646 = vunpack.c.l.b16 %v511
    %v647 = vunpack.c.l.b16 %v512
    %v648 = vunpack.c.l.b16 %v513
    %v649 = vunpack.c.l.b16 %v514
    %v650 = vunpack.c.l.b16 %v515
    %v651 = vunpack.c.l.b16 %v516
    %v652 = vunpack.c.l.b16 %v517
    %v653 = vunpack.c.l.b16 %v518
    %v654 = vunpack.c.l.b16 %v519
    %v655 = vunpack.c.l.b16 %v520
    %v656 = vunpack.c.l.b16 %v521
    %v657 = vunpack.c.l.b16 %v522
    %v658 = vunpack.c.l.b16 %v523
    %v659 = vunpack.c.l.b16 %v524
    %v660 = vunpack.c.l.b16 %v525
    %v661 = vunpack.c.l.b16 %v526
    %v662 = vunpack.c.l.b16 %v527
    %v663 = vunpack.c.l.b16 %v528
    %v664 = vunpack.c.l.b16 %v529
    %v665 = vunpack.c.l.b16 %v530
    %v666 = vunpack.c.l.b16 %v531
    %v667 = vunpack.c.l.b16 %v532
    %v668 = vunpack.c.l.b16 %v533
    %v669 = vunpack.c.l.b16 %v534
    %v670 = vunpack.c.l.b16 %v535
    %v671 = vunpack.c.l.b16 %v536
    %v672 = vunpack.c.l.b16 %v537
    %v673 = vunpack.c.l.b16 %v538
    %v674 = vunpack.c.l.b16 %v539
    %v675 = vunpack.c.l.b16 %v540
    %v676 = vpack.c.b16 %v613, %v612
    %v677 = vpack.c.b16 %v615, %v614
    %v678 = vpack.c.b16 %v617, %v616
    %v679 = vpack.c.b16 %v619, %v618
    %v680 = vpack.c.b16 %v621, %v620
    %v681 = vpack.c.b16 %v623, %v622
    %v682 = vpack.c.b16 %v625, %v624
    %v683 = vpack.c.b16 %v627, %v626
    %v684 = vpack.c.b16 %v629, %v628
    %v685 = vpack.c.b16 %v631, %v630
    %v686 = vpack.c.b16 %v633, %v632
    %v687 = vpack.c.b16 %v635, %v634
    %v688 = vpack.c.b16 %v637, %v636
    %v689 = vpack.c.b16 %v639, %v638
    %v690 = vpack.c.b16 %v641, %v640
    %v691 = vpack.c.b16 %v643, %v642
    %v692 = vpack.c.b16 %v645, %v644
    %v693 = vpack.c.b16 %v647, %v646
    %v694 = vpack.c.b16 %v649, %v648
    %v695 = vpack.c.b16 %v651, %v650
    %v696 = vpack.c.b16 %v653, %v652
    %v697 = vpack.c.b16 %v655, %v654
    %v698 = vpack.c.b16 %v657, %v656
    %v699 = vpack.c.b16 %v659, %v658
    %v700 = vpack.c.b16 %v661, %v660
    %v701 = vpack.c.b16 %v663, %v662
    %v702 = vpack.c.b16 %v665, %v664
    %v703 = vpack.c.b16 %v667, %v666
    %v704 = vpack.c.b16 %v669, %v668
    %v705 = vpack.c.b16 %v671, %v670
    %v706 = vpack.c.b16 %v673, %v672
    %v707 = vpack.c.b16 %v675, %v674
    %740 = vmatprep.subr.bf16.mxu0 0
    %741 = vmatpush1.bf16.msra.mxu0 %v683
    %742 = vmatprep.subr.bf16.mxu0 0
    %743 = vmatpush1.bf16.msra.mxu0 %v682
    %744 = vmatprep.subr.bf16.mxu0 0
    %745 = vmatpush1.bf16.msra.mxu0 %v681
    %746 = vmatprep.subr.bf16.mxu0 0
    %747 = vmatpush1.bf16.msra.mxu0 %v680
    %748 = vmatprep.subr.bf16.mxu0 0
    %749 = vmatpush1.bf16.msra.mxu0 %v679
    %750 = vmatprep.subr.bf16.mxu0 0
    %751 = vmatpush1.bf16.msra.mxu0 %v678
    %752 = vmatprep.subr.bf16.mxu0 0
    %753 = vmatpush1.bf16.msra.mxu0 %v677
    %754 = vmatprep.subr.bf16.mxu0 0
    %755 = vmatpush1.bf16.msra.mxu0 %v676
    %756 = vmatprep.subr.bf16.mxu0 0
    %757 = vmatpush2.bf16.msra.mxu0 %v691
    %758 = vmatprep.subr.bf16.mxu0 0
    %759 = vmatpush2.bf16.msra.mxu0 %v690
    %760 = vmatprep.subr.bf16.mxu0 0
    %761 = vmatpush2.bf16.msra.mxu0 %v689
    %762 = vmatprep.subr.bf16.mxu0 0
    %763 = vmatpush2.bf16.msra.mxu0 %v688
    %764 = vmatprep.subr.bf16.mxu0 0
    %765 = vmatpush2.bf16.msra.mxu0 %v687
    %766 = vmatprep.subr.bf16.mxu0 0
    %767 = vmatpush2.bf16.msra.mxu0 %v686
    %768 = vmatprep.subr.bf16.mxu0 0
    %769 = vmatpush2.bf16.msra.mxu0 %v685
    %770 = vmatprep.subr.bf16.mxu0 0
    %771 = vmatpush2.bf16.msra.mxu0 %v684
    %772 = vmatprep.mubr.bf16.mxu0 %v474
    %773 = vmatmul.mubr.bf16.gmra.mxu0 %v473
    %v774 = vpop.f32.mrf.mxu0
    %v775 = vadd.f32 %v546, %v774
    %v776 = vpop.f32.mrf.mxu0
    %v777 = vpop.f32.mrf.mxu0
    %v778 = vadd.f32 %v546, %v777
    %v779 = vpop.f32.mrf.mxu0
    %780 = vdwg.mxu0
    %781 = vmatprep.subr.bf16.mxu0 0
    %782 = vmatpush1.bf16.msra.mxu0 %v699
    %783 = vmatprep.subr.bf16.mxu0 0
    %784 = vmatpush1.bf16.msra.mxu0 %v698
    %785 = vmatprep.subr.bf16.mxu0 0
    %786 = vmatpush1.bf16.msra.mxu0 %v697
    %787 = vmatprep.subr.bf16.mxu0 0
    %788 = vmatpush1.bf16.msra.mxu0 %v696
    %789 = vmatprep.subr.bf16.mxu0 0
    %790 = vmatpush1.bf16.msra.mxu0 %v695
    %791 = vmatprep.subr.bf16.mxu0 0
    %792 = vmatpush1.bf16.msra.mxu0 %v694
    %793 = vmatprep.subr.bf16.mxu0 0
    %794 = vmatpush1.bf16.msra.mxu0 %v693
    %795 = vmatprep.subr.bf16.mxu0 0
    %796 = vmatpush1.bf16.msra.mxu0 %v692
    %797 = vmatprep.subr.bf16.mxu0 0
    %798 = vmatpush2.bf16.msra.mxu0 %v707
    %799 = vmatprep.subr.bf16.mxu0 0
    %800 = vmatpush2.bf16.msra.mxu0 %v706
    %801 = vmatprep.subr.bf16.mxu0 0
    %802 = vmatpush2.bf16.msra.mxu0 %v705
    %803 = vmatprep.subr.bf16.mxu0 0
    %804 = vmatpush2.bf16.msra.mxu0 %v704
    %805 = vmatprep.subr.bf16.mxu0 0
    %806 = vmatpush2.bf16.msra.mxu0 %v703
    %807 = vmatprep.subr.bf16.mxu0 0
    %808 = vmatpush2.bf16.msra.mxu0 %v702
    %809 = vmatprep.subr.bf16.mxu0 0
    %810 = vmatpush2.bf16.msra.mxu0 %v701
    %811 = vmatprep.subr.bf16.mxu0 0
    %812 = vmatpush2.bf16.msra.mxu0 %v700
    %813 = vmatprep.mubr.bf16.mxu0 %v476
    %814 = vmatmul.mubr.bf16.gmra.mxu0 %v475
    %v815 = vpop.f32.mrf.mxu0
    %v816 = vadd.f32 %v775, %v815
    %v817 = vpop.f32.mrf.mxu0
    %v818 = vpop.f32.mrf.mxu0
    %v819 = vadd.f32 %v778, %v818
    %v820 = vpop.f32.mrf.mxu0
    %821 = vdwg.mxu0
    %822 = vst [vmem:[#allocation8] sm:$0xff] %v816
    %823 = vst [vmem:[#allocation8 + $0x8] sm:$0xff] %v819
    // Predicated region
    $region38: #{tpu_custom_call.1} parent=1 // pred_check
      _
    $region39: #{tpu_custom_call.1} parent=1 // pred_check_branch
      %825 = sbr.rel (0) target = $region41
    $region40: #{tpu_custom_call.1} parent=1 // pred_region
      %s827 = ssub.s32 256, 256
      %828 = vsyncadd [#allocation4], %s827
      %s829 = sshll.u32 [#allocation8], 4
      %s830 = int_to_ptr.vmem [resolvable:$true] %s829
      %835 = dma.vmem_to_hbm [thread:$0]  %s830, 256, %s6, [#allocation4], 128, 128, 8
    $region41: #{tpu_custom_call.1} parent=1 // pred_fallthru
      _
    // Predicated region
    $region42: #{tpu_custom_call.1} parent=1 // pred_check
      _
    $region43: #{tpu_custom_call.1} parent=1 // pred_check_branch
      %837 = sbr.rel (0) target = $region45
    $region44: #{tpu_custom_call.1} parent=1 // pred_region
      %838 = dma.done [#allocation4], 256
    $region45: #{tpu_custom_call.1} parent=1 // pred_fallthru
      _
    %839 = vsyncpa [#allocation3], 1
    %840 = vsyncpa [#allocation6], 1
    %841 = vsyncpa [#allocation4], 1

</llo_original>
